<compile_context>
chip_gen: v6e
topology: v6e:2x2x1
jax: 0.10.0
libtpu: 0.0.40
codegen_flags: <defaults>
</compile_context>

<pallas_src>
import functools

import jax
import jax.numpy as jnp
from jax.experimental import pallas as pl
from jax.experimental.pallas import tpu as pltpu


def _gap_classifier_kernel(x_ref, w_ref, b_ref, out_ref, acc_ref, *, num_ch):
    # x_ref  : (1, b_tile, C, s_tile) f32  -- one batch block x one spatial chunk
    # w_ref  : (C, NC_pad) f32             -- folded classifier weights (resident)
    # b_ref  : (1, NC_pad) f32             -- folded bias (resident)
    # out_ref: (1, b_tile, NC_pad) f32
    # acc_ref: (b_tile, C) f32 VMEM scratch, persists across the spatial axis
    k = pl.program_id(1)

    @pl.when(k == 0)
    def _():
        acc_ref[...] = jnp.zeros_like(acc_ref)

    # Partial per-channel spatial sum for this chunk (cross-lane reduce on XLU;
    # off the critical path -- the kernel is HBM-bandwidth bound).
    acc_ref[...] += jnp.sum(x_ref[0], axis=-1)

    @pl.when(k == pl.num_programs(1) - 1)
    def _():
        feat = acc_ref[...]  # (b_tile, C) raw spatial sums of un-normalized x
        # Tiny K=C contraction on the VPU (avoid a 3-deep MXU matmul).
        logits = feat[:, 0:1] * w_ref[0:1, :] + b_ref[...]
        for c in range(1, num_ch):
            logits = logits + feat[:, c:c + 1] * w_ref[c:c + 1, :]
        out_ref[0] = logits


def timm_model_forward(x_nchw, mean, std, w, b, *, b_tile=1, max_s_tile=2048):
    """(x - mean) / std  ->  synthetic backbone (GAP + linear)."""
    # TODO(synk): the real timm backbone (conv/attention stages) is an external
    # model object passed to __init__; substituted by a GAP+linear head here.
    B, C, H, W = x_nchw.shape
    NC = w.shape[1]
    HW = H * W
    if b_tile <= 0 or B % b_tile != 0:
        b_tile = 1
    nb = B // b_tile

    f32 = jnp.float32
    x3 = x_nchw.astype(f32).reshape(B, C, HW)

    # Lane-align the spatial axis.  Zero padding is exact here: padded zeros
    # add nothing to sum_hw(x), and the folded weights divide by the TRUE H*W.
    # (Pad path only triggers for non-128-aligned spatial sizes; 224x224 etc.
    # are already aligned, so no extra HBM copy in the common case.)
    if HW % 128 == 0:
        hw_pad = HW
    else:
        hw_pad = ((HW + 127) // 128) * 128
        x3 = jnp.pad(x3, ((0, 0), (0, 0), (0, hw_pad - HW)))

    # Spatial tile: the largest multiple of 128 (<= cap) that divides hw_pad.
    s_tile = hw_pad
    cap = (min(max_s_tile, hw_pad) // 128) * 128
    for cand in range(cap, 0, -128):
        if hw_pad % cand == 0:
            s_tile = cand
            break
    ns = hw_pad // s_tile

    # Fold (x - mean)/std and the 1/(H*W) GAP factor into the classifier:
    #   logits = mean_hw((x - mean)/std) @ W + b
    #          = sum_hw(x) @ (W * inv_std[:, None] / (H*W)) + (b - (mean*inv_std) @ W)
    mean = mean.reshape(C).astype(f32)
    std = std.reshape(C).astype(f32)
    w = w.astype(f32)
    b = b.reshape(NC).astype(f32)
    inv_std = 1.0 / std
    w_fold = (w * inv_std[:, None]) / float(HW)
    b_fold = b - (mean * inv_std) @ w

    # Lane-dense output: pad the class dim to a multiple of 128, slice later.
    nc_pad = max(128, ((NC + 127) // 128) * 128)
    w_p = jnp.zeros((C, nc_pad), f32).at[:, :NC].set(w_fold)
    b_p = jnp.zeros((1, nc_pad), f32).at[0, :NC].set(b_fold)

    x4 = x3.reshape(nb, b_tile, C, hw_pad)

    kernel = functools.partial(_gap_classifier_kernel, num_ch=C)

    out = pl.pallas_call(
        kernel,
        out_shape=jax.ShapeDtypeStruct((nb, b_tile, nc_pad), f32),
        grid=(nb, ns),
        in_specs=[
            pl.BlockSpec((1, b_tile, C, s_tile), lambda i, k: (i, 0, 0, k)),
            pl.BlockSpec((C, nc_pad), lambda i, k: (0, 0)),
            pl.BlockSpec((1, nc_pad), lambda i, k: (0, 0)),
        ],
        out_specs=pl.BlockSpec((1, b_tile, nc_pad), lambda i, k: (i, 0, 0)),
        scratch_shapes=[pltpu.VMEM((b_tile, C), f32)],
        compiler_params=pltpu.CompilerParams(
            dimension_semantics=("parallel", "arbitrary"),
            vmem_limit_bytes=32 * 1024 * 1024,  # explicit, portable (v7x 64 MiB phys)
        ),
    )(x4, w_p, b_p)

    return out.reshape(B, nc_pad)[:, :NC]


if __name__ == "__main__":
    # Small shapes consistent with the module: NCHW image batch, 3 channels.
    B, C, H, W = 2, 3, 16, 16
    NUM_CLASSES = 16

    key = jax.random.PRNGKey(0)
    k_x, k_w, k_b = jax.random.split(key, 3)

    x = jax.random.uniform(k_x, (B, C, H, W), dtype=jnp.float32)  # images in [0, 1]

    # ImageNet default_cfg normalization constants (as in timm default_cfg).
    mean = jnp.array([0.485, 0.456, 0.406], dtype=jnp.float32)
    std = jnp.array([0.229, 0.224, 0.225], dtype=jnp.float32)

    # Deterministic synthetic classifier parameters.
    w = jax.random.normal(k_w, (C, NUM_CLASSES), dtype=jnp.float32) * 0.1
    b = jax.random.normal(k_b, (NUM_CLASSES,), dtype=jnp.float32) * 0.01

    # max_s_tile=128 so the demo exercises the multi-step spatial accumulation.
    out = timm_model_forward(x, mean, std, w, b, b_tile=1, max_s_tile=128)
    out = jax.block_until_ready(out)

    # Pure-JAX reference: explicit (x - mean)/std, then GAP + linear.
    xn_ref = (x - mean[None, :, None, None]) / std[None, :, None, None]
    feat_ref = jnp.mean(xn_ref, axis=(2, 3))
    ref = feat_ref @ w + b[None, :]

    assert out.shape == (B, NUM_CLASSES)
    assert jnp.allclose(out, ref, atol=1e-4, rtol=1e-4), "mismatch vs reference"

    print("KERNEL_OK")
</pallas_src>

<mosaic_0001>
module attributes {stable_mosaic.version = 11 : i64} {
  func.func @_gap_classifier_kernel(%arg0: i32, %arg1: i32, %arg2: memref<1x1x3x128xf32, #tpu.memory_space<vmem>>, %arg3: memref<3x128xf32, #tpu.memory_space<vmem>>, %arg4: memref<1x128xf32, #tpu.memory_space<vmem>>, %arg5: memref<1x1x128xf32, #tpu.memory_space<vmem>>, %arg6: memref<1x3xf32, #tpu.memory_space<vmem>>) attributes {dimension_semantics = [#tpu.dimension_semantics<parallel>, #tpu.dimension_semantics<arbitrary>], iteration_bounds = array<i64: 2, 2>, scalar_prefetch = 0 : i64, scratch_operands = 1 : i64, tpu.core_type = #tpu.core_type<tc>, window_params = [{transform_indices = @transform_0, window_bounds = array<i64: 1, 1, 3, 128>}, {pipeline_mode = #tpu.pipeline_mode<synchronous>, transform_indices = @transform_1, window_bounds = array<i64: 3, 128>}, {pipeline_mode = #tpu.pipeline_mode<synchronous>, transform_indices = @transform_2, window_bounds = array<i64: 1, 128>}, {transform_indices = @transform_3, window_bounds = array<i64: 1, 1, 128>}]} {
    %c0_i32 = arith.constant 0 : i32
    %0 = arith.cmpi eq, %arg1, %c0_i32 : i32
    %1 = arith.extui %0 : i1 to i32
    %c0_i32_0 = arith.constant 0 : i32
    %2 = arith.cmpi ne, %1, %c0_i32_0 : i32
    scf.if %2 {
      %cst_9 = arith.constant 0.000000e+00 : f32
      %12 = vector.broadcast %cst_9 : f32 to vector<1x3xf32>
      %c0_10 = arith.constant 0 : index
      %c0_11 = arith.constant 0 : index
      %13 = vector.load %arg6[%c0_10, %c0_11] : memref<1x3xf32, #tpu.memory_space<vmem>>, vector<1x3xf32>
      tpu.vector_store %arg6[%c0_10, %c0_11], %12 {strides = array<i32>} : memref<1x3xf32, #tpu.memory_space<vmem>>, vector<1x3xf32>,
    } else {
    }
    %c0 = arith.constant 0 : index
    %c0_1 = arith.constant 0 : index
    %3 = vector.load %arg6[%c0, %c0_1] : memref<1x3xf32, #tpu.memory_space<vmem>>, vector<1x3xf32>
    %c0_2 = arith.constant 0 : index
    %c0_3 = arith.constant 0 : index
    %c0_4 = arith.constant 0 : index
    %c0_5 = arith.constant 0 : index
    %4 = vector.load %arg2[%c0_2, %c0_3, %c0_4, %c0_5] : memref<1x1x3x128xf32, #tpu.memory_space<vmem>>, vector<1x1x3x128xf32>
    %5 = vector.shape_cast %4 : vector<1x1x3x128xf32> to vector<1x3x128xf32>
    %cst = arith.constant dense<0.000000e+00> : vector<1x3xf32>
    %6 = vector.multi_reduction <add>, %5, %cst [2] : vector<1x3x128xf32> to vector<1x3xf32>
    %7 = arith.addf %3, %6 : vector<1x3xf32>
    %c0_6 = arith.constant 0 : index
    %c0_7 = arith.constant 0 : index
    %8 = vector.load %arg6[%c0_6, %c0_7] : memref<1x3xf32, #tpu.memory_space<vmem>>, vector<1x3xf32>
    tpu.vector_store %arg6[%c0_6, %c0_7], %7 {strides = array<i32>} : memref<1x3xf32, #tpu.memory_space<vmem>>, vector<1x3xf32>,
    %c1_i32 = arith.constant 1 : i32
    %9 = arith.cmpi eq, %arg1, %c1_i32 : i32
    %10 = arith.extui %9 : i1 to i32
    %c0_i32_8 = arith.constant 0 : i32
    %11 = arith.cmpi ne, %10, %c0_i32_8 : i32
    scf.if %11 {
      %c0_9 = arith.constant 0 : index
      %c0_10 = arith.constant 0 : index
      %12 = vector.load %arg6[%c0_9, %c0_10] : memref<1x3xf32, #tpu.memory_space<vmem>>, vector<1x3xf32>
      %13 = vector.extract_strided_slice %12 {offsets = [0, 0], sizes = [1, 1], strides = [1, 1]} : vector<1x3xf32> to vector<1x1xf32>
      %c0_11 = arith.constant 0 : index
      %c0_12 = arith.constant 0 : index
      %14 = vector.load %arg3[%c0_11, %c0_12] : memref<3x128xf32, #tpu.memory_space<vmem>>, vector<1x128xf32>
      %15 = vector.broadcast %13 : vector<1x1xf32> to vector<1x128xf32>
      %16 = arith.mulf %15, %14 : vector<1x128xf32>
      %c0_13 = arith.constant 0 : index
      %c0_14 = arith.constant 0 : index
      %17 = vector.load %arg4[%c0_13, %c0_14] : memref<1x128xf32, #tpu.memory_space<vmem>>, vector<1x128xf32>
      %18 = arith.addf %16, %17 : vector<1x128xf32>
      %19 = vector.extract_strided_slice %12 {offsets = [0, 1], sizes = [1, 1], strides = [1, 1]} : vector<1x3xf32> to vector<1x1xf32>
      %c1 = arith.constant 1 : index
      %c0_15 = arith.constant 0 : index
      %20 = vector.load %arg3[%c1, %c0_15] : memref<3x128xf32, #tpu.memory_space<vmem>>, vector<1x128xf32>
      %21 = vector.broadcast %19 : vector<1x1xf32> to vector<1x128xf32>
      %22 = arith.mulf %21, %20 : vector<1x128xf32>
      %23 = arith.addf %18, %22 : vector<1x128xf32>
      %24 = vector.extract_strided_slice %12 {offsets = [0, 2], sizes = [1, 1], strides = [1, 1]} : vector<1x3xf32> to vector<1x1xf32>
      %c2 = arith.constant 2 : index
      %c0_16 = arith.constant 0 : index
      %25 = vector.load %arg3[%c2, %c0_16] : memref<3x128xf32, #tpu.memory_space<vmem>>, vector<1x128xf32>
      %26 = vector.broadcast %24 : vector<1x1xf32> to vector<1x128xf32>
      %27 = arith.mulf %26, %25 : vector<1x128xf32>
      %28 = arith.addf %23, %27 : vector<1x128xf32>
      %c0_17 = arith.constant 0 : index
      %c0_18 = arith.constant 0 : index
      %c0_19 = arith.constant 0 : index
      %29 = vector.load %arg5[%c0_17, %c0_18, %c0_19] : memref<1x1x128xf32, #tpu.memory_space<vmem>>, vector<1x1x128xf32>
      %30 = vector.shape_cast %29 : vector<1x1x128xf32> to vector<1x128xf32>
      %31 = vector.shape_cast %28 : vector<1x128xf32> to vector<1x1x128xf32>
      tpu.vector_store %arg5[%c0_17, %c0_18, %c0_19], %31 {strides = array<i32>} : memref<1x1x128xf32, #tpu.memory_space<vmem>>, vector<1x1x128xf32>,
    } else {
    }
    return
  }
  func.func @transform_0(%arg0: i32, %arg1: i32) -> (i32, i32, i32, i32) {
    %c0_i32 = arith.constant 0 : i32
    %c0_i32_0 = arith.constant 0 : i32
    %c0_i32_1 = arith.constant 0 : i32
    return %arg0, %c0_i32, %c0_i32_0, %arg1 : i32, i32, i32, i32
  }
  func.func @transform_1(%arg0: i32, %arg1: i32) -> (i32, i32) {
    %c0_i32 = arith.constant 0 : i32
    %c0_i32_0 = arith.constant 0 : i32
    %c0_i32_1 = arith.constant 0 : i32
    return %c0_i32, %c0_i32_0 : i32, i32
  }
  func.func @transform_2(%arg0: i32, %arg1: i32) -> (i32, i32) {
    %c0_i32 = arith.constant 0 : i32
    %c0_i32_0 = arith.constant 0 : i32
    %c0_i32_1 = arith.constant 0 : i32
    return %c0_i32, %c0_i32_0 : i32, i32
  }
  func.func @transform_3(%arg0: i32, %arg1: i32) -> (i32, i32, i32) {
    %c0_i32 = arith.constant 0 : i32
    %c0_i32_0 = arith.constant 0 : i32
    %c0_i32_1 = arith.constant 0 : i32
    return %arg0, %c0_i32, %c0_i32_0 : i32, i32, i32
  }
}

</mosaic_0001>

<llo_original>
// kernel: tpu_custom_call.1
$region0: #{tpu_custom_call.1}
  #allocation0 [shape = 'u32[]', space=smem, size = 0x4, offset = 0x4, fixed_abs, tag = 'smem constant byte address 0x4 - core index']
  #allocation1 [shape = 'u32[144,128]{1,0:T(1,128)}', space=vmem, size = 0x12000, scoped, tag = 'internal scratch']
  #allocation2 [shape = 'f32[1,3]{1,0:T(1,128)}', space=vmem, size = 0x200, scoped, tag = 'scratch operand']
  %s0 = inlined_call_operand.vmem [shape: f32[2,1,3,256], index: 0, kind: input, shape index: {}]
  %s1 = inlined_call_operand.vmem [shape: f32[3,128], index: 1, kind: input, shape index: {}]
  %s2 = inlined_call_operand.vmem [shape: f32[1,128], index: 2, kind: input, shape index: {}]
  %s3 = inlined_call_operand.hbm [shape: f32[2,1,128], index: 3, kind: output, shape index: {}]
  %s4 = sld [smem:[#allocation0]]
  $region53: #{tpu_custom_call.1} parent=0
    _
  %s6 = ssub.s32 1, %s4
  %s7 = scalar_select 0, %s6, %s4
  $region1: #{tpu_custom_call.1} parent=0
    #allocation3 [shape = 'u8[1024]{0}', space=vmem, size = 0x400, scoped, tag = 'output window, operand 0']
    #allocation4 [shape = 's32[2]{0}', space=sflag, size = 0x8, scoped, tag = 'scoped memory for tpu_custom_call.1']
    %8 = vsyncpa [#allocation4], 0
    %s9 = scalar_lea.sflag [#allocation4], 1
    %10 = vsyncpa %s9, 0
    loop: start=0, step=1, limit=6
    $region2: #{tpu_custom_call.1} parent=1 // loop_pre_header
      _
    $region3: #{tpu_custom_call.1} parent=1 // loop_header
      %s12 = sphi 0, %s16
      %p13 = scmp.ge.s32.totalorder %s12, 6
      %s19 = sphi 0, %s31
      %s20 = sphi 0, %s27
      %s21 = sphi 0, %s19
      %s22 = sphi 0, %s20
      %s23 = sphi 0, %s21
      %s24 = sphi 0, %s22
      %s36 = sphi 0, %s38
      %s39 = sphi 0, %s36
      %s40 = sphi 0, %s39
      %s56 = sphi 0, %s40
      %s60 = sphi 0, %s60
      %s62 = sphi 0, %s60
      %s63 = sphi 0, %s62
      %s77 = sphi 0, %s63
      %s81 = sphi 0, %s81
      %s83 = sphi 0, %s81
      %s84 = sphi 0, %s83
      %s98 = sphi 0, %s84
      %s104 = sphi 0, %s106
      %s107 = sphi 0, %s104
      %s108 = sphi 0, %s107
      %s124 = sphi 0, %s108
    $region4: #{tpu_custom_call.1} parent=1 // loop_header_branch
      %15 = sbr.rel (%p13) target = $region8
    $region5: #{tpu_custom_call.1} parent=1 // loop_body
      %s17 = ssub.s32 %s12, 1
      %s18 = ssub.s32 %s12, 2
      %s25 = sadd.s32 1, %s20
      %p26 = scmp.ge.s32.totalorder %s25, 2
      %s27 = scalar_select %p26, 0, %s25
      %s28 = sadd.s32 1, %s19
      %s29 = scalar_select %p26, %s28, %s19
      %p30 = scmp.ge.s32.totalorder %s29, 2
      %s31 = scalar_select %p30, 0, %s29
      %s32 = ssub.s32 %s19, %s31
      %s33 = ssub.s32 %s20, %s27
      %s34 = sor.u32 %s32, %s33
      %p35 = scmp.eq.s32.totalorder %s34, 0
      %s37 = sadd.s32 %s36, 1
      %s38 = scalar_select %p35, %s36, %s37
      %p41 = pneg %p35
      %p42 = scmp.eq.s32.totalorder %s12, 3
      %p43 = por %p41, %p42
      %p44 = scmp.ne.s32.totalorder %s36, %s39
      %p45 = scmp.eq.s32.totalorder %s12, 0
      %p46 = por %p44, %p45
      %p47 = scmp.ne.s32.totalorder %s36, %s39
      %p48 = scmp.eq.s32.totalorder %s17, 3
      %p49 = por %p47, %p48
      %p50 = scmp.ne.s32.totalorder %s39, %s40
      %p51 = scmp.eq.s32.totalorder %s17, 0
      %p52 = por %p50, %p51
      %p53 = scmp.ne.s32.totalorder %s39, %s40
      %p54 = scmp.eq.s32.totalorder %s18, 3
      %p55 = por %p53, %p54
      %p57 = scmp.ne.s32.totalorder %s40, %s56
      %p58 = scmp.eq.s32.totalorder %s18, 0
      %p59 = por %p57, %p58
      %s61 = sadd.s32 %s60, 1
      %p64 = scmp.eq.s32.totalorder %s12, 3
      %p65 = scmp.ne.s32.totalorder %s60, %s62
      %p66 = scmp.eq.s32.totalorder %s12, 0
      %p67 = por %p65, %p66
      %p68 = scmp.ne.s32.totalorder %s60, %s62
      %p69 = scmp.eq.s32.totalorder %s17, 3
      %p70 = por %p68, %p69
      %p71 = scmp.ne.s32.totalorder %s62, %s63
      %p72 = scmp.eq.s32.totalorder %s17, 0
      %p73 = por %p71, %p72
      %p74 = scmp.ne.s32.totalorder %s62, %s63
      %p75 = scmp.eq.s32.totalorder %s18, 3
      %p76 = por %p74, %p75
      %p78 = scmp.ne.s32.totalorder %s63, %s77
      %p79 = scmp.eq.s32.totalorder %s18, 0
      %p80 = por %p78, %p79
      %s82 = sadd.s32 %s81, 1
      %p85 = scmp.eq.s32.totalorder %s12, 3
      %p86 = scmp.ne.s32.totalorder %s81, %s83
      %p87 = scmp.eq.s32.totalorder %s12, 0
      %p88 = por %p86, %p87
      %p89 = scmp.ne.s32.totalorder %s81, %s83
      %p90 = scmp.eq.s32.totalorder %s17, 3
      %p91 = por %p89, %p90
      %p92 = scmp.ne.s32.totalorder %s83, %s84
      %p93 = scmp.eq.s32.totalorder %s17, 0
      %p94 = por %p92, %p93
      %p95 = scmp.ne.s32.totalorder %s83, %s84
      %p96 = scmp.eq.s32.totalorder %s18, 3
      %p97 = por %p95, %p96
      %p99 = scmp.ne.s32.totalorder %s84, %s98
      %p100 = scmp.eq.s32.totalorder %s18, 0
      %p101 = por %p99, %p100
      %s102 = ssub.s32 %s19, %s31
      %p103 = scmp.eq.s32.totalorder %s102, 0
      %s105 = sadd.s32 %s104, 1
      %s106 = scalar_select %p103, %s104, %s105
      %p109 = pneg %p103
      %p110 = scmp.eq.s32.totalorder %s12, 3
      %p111 = por %p109, %p110
      %p112 = scmp.ne.s32.totalorder %s104, %s107
      %p113 = scmp.eq.s32.totalorder %s12, 0
      %p114 = por %p112, %p113
      %p115 = scmp.ne.s32.totalorder %s104, %s107
      %p116 = scmp.eq.s32.totalorder %s17, 3
      %p117 = por %p115, %p116
      %p118 = scmp.ne.s32.totalorder %s107, %s108
      %p119 = scmp.eq.s32.totalorder %s17, 0
      %p120 = por %p118, %p119
      %p121 = scmp.ne.s32.totalorder %s107, %s108
      %p122 = scmp.eq.s32.totalorder %s18, 3
      %p123 = por %p121, %p122
      %p125 = scmp.ne.s32.totalorder %s108, %s124
      %p126 = scmp.eq.s32.totalorder %s18, 0
      %p127 = por %p125, %p126
      %p128 = scmp.le.s32.totalorder 1, %s12
      %p129 = scmp.lt.s32.totalorder %s12, 5
      %p130 = pnand %p128, %p129
      %p131 = pneg %p130
      // Predicated region
      $region9: #{tpu_custom_call.1} parent=5 // pred_check
        _
      $region10: #{tpu_custom_call.1} parent=5 // pred_check_branch
        %133 = sbr.rel (%p130) target = $region12
      $region11: #{tpu_custom_call.1} parent=5 // pred_region
        %s134 = ssub.s32 %s12, 1
        // Predicated region
        $region13: #{tpu_custom_call.1} parent=11 // pred_check
          %p135 = pneg %p73
        $region14: #{tpu_custom_call.1} parent=11 // pred_check_branch
          %137 = sbr.rel (%p135) target = $region16
        $region15: #{tpu_custom_call.1} parent=11 // pred_region
          _
        $region16: #{tpu_custom_call.1} parent=11 // pred_fallthru
          _
        // Predicated region
        $region17: #{tpu_custom_call.1} parent=11 // pred_check
          %p138 = pneg %p94
        $region18: #{tpu_custom_call.1} parent=11 // pred_check_branch
          %140 = sbr.rel (%p138) target = $region20
        $region19: #{tpu_custom_call.1} parent=11 // pred_region
          _
        $region20: #{tpu_custom_call.1} parent=11 // pred_fallthru
          _
      $region12: #{tpu_custom_call.1} parent=5 // pred_fallthru
        _
      %p141 = scmp.lt.s32.totalorder %s12, 4
      // Predicated region
      $region21: #{tpu_custom_call.1} parent=5 // pred_check
        %p142 = pneg %p141
      $region22: #{tpu_custom_call.1} parent=5 // pred_check_branch
        %144 = sbr.rel (%p142) target = $region24
      $region23: #{tpu_custom_call.1} parent=5 // pred_region
        // Predicated region
        $region25: #{tpu_custom_call.1} parent=23 // pred_check
          %p145 = pneg %p46
        $region26: #{tpu_custom_call.1} parent=23 // pred_check_branch
          %147 = sbr.rel (%p145) target = $region28
        $region27: #{tpu_custom_call.1} parent=23 // pred_region
          %p148 = scmp.lt.s32.totalorder %s19, 1
          %s149 = scalar_select %p148, %s19, 1
          %p150 = scmp.lt.s32.totalorder %s20, 1
          %s151 = scalar_select %p150, %s20, 1
          %s152 = smul.addr %s149, 2
          %s153 = sadd.s32 %s151, %s152
          %s154 = smul.addr %s153, 4
          %s155 = scalar_lea.vmem %s0, %s154
        $region28: #{tpu_custom_call.1} parent=23 // pred_fallthru
          _
      $region24: #{tpu_custom_call.1} parent=5 // pred_fallthru
        _
      %p156 = scmp.le.s32.totalorder 1, %s12
      %p157 = scmp.lt.s32.totalorder %s12, 5
      %p158 = pnand %p156, %p157
      %p159 = pneg %p158
      // Predicated region
      $region29: #{tpu_custom_call.1} parent=5 // pred_check
        _
      $region30: #{tpu_custom_call.1} parent=5 // pred_check_branch
        %161 = sbr.rel (%p158) target = $region32
      $region31: #{tpu_custom_call.1} parent=5 // pred_region
        %s162 = ssub.s32 %s12, 1
        %p163 = scmp.lt.s32.totalorder %s21, 1
        %s164 = scalar_select %p163, %s21, 1
        %p165 = scmp.lt.s32.totalorder %s22, 1
        %s166 = scalar_select %p165, %s22, 1
        %s167 = smul.addr %s164, 2
        %s168 = sadd.s32 %s166, %s167
        %s169 = smul.addr %s168, 4
        %s170 = scalar_lea.vmem %s0, %s169
        %p171 = pneg %p52
        %p172 = pneg %p49
        %p173 = pneg %p73
        %p174 = pneg %p70
        %p175 = pneg %p94
        %p176 = pneg %p91
        %p177 = pneg %p120
        %p178 = pneg %p117
        %s179 = sand.u32 %s107, 1
        %s180 = scalar_lea.sflag [#allocation4], %s179
        %s181 = sand.u32 %s107, 1
        %s182 = scalar_lea.vmem [#allocation3], %s181
        %p183 = scmp.lt.s32.totalorder %s21, 1
        %s184 = scalar_select %p183, %s21, 1
        %p185 = scmp.lt.s32.totalorder %s22, 1
        %s186 = scalar_select %p185, %s22, 1
        %s187 = smul.addr %s184, 2
        %s188 = sadd.s32 %s186, %s187
        %s189 = smul.addr %s188, 4
        %s190 = scalar_lea.vmem %s0, %s189
        %p191 = scmp.eq.s32.totalorder %s22, 0
        // Predicated region
        $region33: #{tpu_custom_call.1} parent=31 // pred_check
          %p192 = pneg %p191
        $region34: #{tpu_custom_call.1} parent=31 // pred_check_branch
          %194 = sbr.rel (%p192) target = $region36
        $region35: #{tpu_custom_call.1} parent=31 // pred_region
          %vm195 = vcmask 16384
          %196 = vst.msk [vmem:[#allocation2] sm:$0x1] %vm195, 0.0
        $region36: #{tpu_custom_call.1} parent=31 // pred_fallthru
          _
        %v197 = vld [vmem:[#allocation2] sm:$0x1]
        %v198 = vld [vmem:[%s190] sm:$0x7]
        %vm199 = vcmask 1042432
        %v200 = vsel %vm199, %v198, 0.0
        %201 = vadd.xlane.f32.xlu0 %v200
        %v202 = vpop.xlane.xlu0 %201
        %v204 = vlaneseq
        %v205 = vshrl.u32 %v204, 7
        %v206 = vsub.s32 0, %v205
        %v207 = vrot.slane %v202, %v206
        %v208 = vlaneseq
        %v209 = vshrl.u32 %v208, 7
        %v210 = vsub.s32 1, %v209
        %v211 = vrot.slane %v202, %v210
        %v212 = vlaneseq
        %v213 = vshrl.u32 %v212, 7
        %v214 = vsub.s32 2, %v213
        %v215 = vrot.slane %v202, %v214
        %v216 = vcombine.low %v207, %v211
        %v218 = vunpack.c.l.s4 1966171168
        %v219 = vunpack.c.0.s8 %v218
        %v220 = vlaneseq
        %v221 = vshrl.u32 %v220, 7
        %v222 = vsub.s32 %v219, %v221
        %v223 = vrot.slane %v216, %v222
        %v225 = vunpack.c.l.s4 1966171168
        %v226 = vunpack.c.0.s8 %v225
        %v227 = vlaneseq
        %v228 = vshrl.u32 %v227, 7
        %v229 = vsub.s32 %v226, %v228
        %v230 = vrot.slane %v215, %v229
        %v231 = vcombine.low %v223, %v230
        %v233 = vunpack.c.l.s4 1966171168
        %v234 = vunpack.c.0.s8 %v233
        %v235 = vlaneseq
        %v236 = vshrl.u32 %v235, 7
        %v237 = vsub.s32 %v234, %v236
        %v238 = vrot.slane %v231, %v237
        %239 = vset.pattern.permute.xlu0 0
        %240 = vperm.xlu0 %239, %v238
        %v241 = vpop.permute.xlu0 %240
        %v242 = vlaneseq
        %v243 = vand.u32 %v242, 127
        %v244 = vlaneseq
        %v245 = vshrl.u32 %v244, 7
        %v246 = vsub.s32 %v243, %v245
        %v247 = vrot.slane %v241, %v246
        %v249 = vunpack.c.l.s4 1966171168
        %v250 = vunpack.c.0.s8 %v249
        %v251 = vlaneseq
        %v252 = vshrl.u32 %v251, 7
        %v253 = vsub.s32 %v250, %v252
        %v254 = vrot.slane %v247, %v253
        %v256 = vunpack.c.l.s4 1966171168
        %v257 = vunpack.c.0.s8 %v256
        %v258 = vlaneseq
        %v259 = vshrl.u32 %v258, 7
        %v260 = vsub.s32 %v257, %v259
        %v261 = vrot.slane %v254, %v260
        %v263 = vadd.f32 %v197, %v261
        %vm264 = vcmask 16384
        %265 = vst.msk [vmem:[#allocation2] sm:$0x1] %vm264, %v263
        %p266 = scmp.eq.s32.totalorder %s22, 1
        // Predicated region
        $region37: #{tpu_custom_call.1} parent=31 // pred_check
          %p267 = pneg %p266
        $region38: #{tpu_custom_call.1} parent=31 // pred_check_branch
          %269 = sbr.rel (%p267) target = $region40
        $region39: #{tpu_custom_call.1} parent=31 // pred_region
          %v270 = vld [vmem:[#allocation2] sm:$0x1]
          %v271 = vld [vmem:[%s1] sm:$0x1]
          %273 = vset.pattern.permute.xlu0 0
          %274 = vperm.xlu0 %273, %v270
          %v275 = vpop.permute.xlu0 %274
          %v277 = vlaneseq
          %v278 = vshrl.u32 %v277, 7
          %v279 = vsub.s32 0, %v278
          %v280 = vrot.slane %v275, %v279
          %v281 = vmul.f32 %v280, %v271
          %v282 = vld [vmem:[%s2] sm:$0x1]
          %v283 = vadd.f32 %v281, %v282
          %v284 = vld [vmem:[%s1 + $0x1] sm:$0x1]
          %285 = vset.pattern.permute.xlu0 1
          %286 = vperm.xlu0 %285, %v270
          %v287 = vpop.permute.xlu0 %286
          %v289 = vlaneseq
          %v290 = vshrl.u32 %v289, 7
          %v291 = vsub.s32 0, %v290
          %v292 = vrot.slane %v287, %v291
          %v293 = vmul.f32 %v292, %v284
          %v294 = vadd.f32 %v283, %v293
          %v295 = vld [vmem:[%s1 + $0x2] sm:$0x1]
          %296 = vset.pattern.permute.xlu0 2
          %297 = vperm.xlu0 %296, %v270
          %v298 = vpop.permute.xlu0 %297
          %v300 = vlaneseq
          %v301 = vshrl.u32 %v300, 7
          %v302 = vsub.s32 0, %v301
          %v303 = vrot.slane %v298, %v302
          %v304 = vmul.f32 %v303, %v295
          %v305 = vadd.f32 %v294, %v304
          %306 = vst [vmem:[%s182] sm:$0x1] %v305
        $region40: #{tpu_custom_call.1} parent=31 // pred_fallthru
          _
        %s307 = sand.u32 %s107, 1
        %s308 = scalar_lea.sflag [#allocation4], %s307
        %s309 = sand.u32 %s107, 1
        %s310 = scalar_lea.vmem [#allocation3], %s309
        // Predicated region
        $region41: #{tpu_custom_call.1} parent=31 // pred_check
          %p311 = pneg %p117
        $region42: #{tpu_custom_call.1} parent=31 // pred_check_branch
          %313 = sbr.rel (%p311) target = $region44
        $region43: #{tpu_custom_call.1} parent=31 // pred_region
          %s315 = ssub.s32 16, 16
          %316 = vsyncadd %s308, %s315
          %s317 = smul.addr %s21, 16
          %s318 = scalar_lea.hbm %s3, %s317
          %s320 = sshll.u32 %s310, 4
          %s321 = int_to_ptr.vmem [resolvable:$true] %s320
          %323 = dma.vmem_to_hbm [thread:$0]  %s321, 16, %s318, %s308
        $region44: #{tpu_custom_call.1} parent=31 // pred_fallthru
          _
      $region32: #{tpu_custom_call.1} parent=5 // pred_fallthru
        _
      %p324 = scmp.le.s32.totalorder 2, %s12
      // Predicated region
      $region45: #{tpu_custom_call.1} parent=5 // pred_check
        %p325 = pneg %p324
      $region46: #{tpu_custom_call.1} parent=5 // pred_check_branch
        %327 = sbr.rel (%p325) target = $region48
      $region47: #{tpu_custom_call.1} parent=5 // pred_region
        %s328 = ssub.s32 %s12, 2
        // Predicated region
        $region49: #{tpu_custom_call.1} parent=47 // pred_check
          %p329 = pneg %p123
        $region50: #{tpu_custom_call.1} parent=47 // pred_check_branch
          %331 = sbr.rel (%p329) target = $region52
        $region51: #{tpu_custom_call.1} parent=47 // pred_region
          %s332 = sand.u32 %s108, 1
          %s333 = scalar_lea.sflag [#allocation4], %s332
          %s334 = sand.u32 %s108, 1
          %s335 = scalar_lea.vmem [#allocation3], %s334
          %336 = dma.done %s333, 16
        $region52: #{tpu_custom_call.1} parent=47 // pred_fallthru
          _
      $region48: #{tpu_custom_call.1} parent=5 // pred_fallthru
        _
    $region6: #{tpu_custom_call.1} parent=1 // loop_footer
      %s16 = sadd.s32 1, %s12
    $region7: #{tpu_custom_call.1} parent=1 // loop_footer_branch
      %11 = sbr.rel target = $region3
    $region8: #{tpu_custom_call.1} parent=1 // loop_exit
      _
    %337 = vsyncpa [#allocation4], 1
    %s338 = scalar_lea.sflag [#allocation4], 1
    %339 = vsyncpa %s338, 1

</llo_original>
